<compile_context>
chip_gen: v6e
topology: v6e:2x2x1
jax: 0.10.0
libtpu: 0.0.40
codegen_flags: <defaults>
</compile_context>

<pallas_src>
import jax
import jax.numpy as jnp
from jax.experimental import pallas as pl
from jax.experimental.pallas import tpu as pltpu


def _relu_kernel(x_ref, o_ref):
    # Elementwise max with a scalar 0 on the VPU (no zero tile / extra broadcast).
    o_ref[...] = jnp.maximum(x_ref[...], 0)


def _round_up(x: int, m: int) -> int:
    return ((x + m - 1) // m) * m


def _lane_dense_2d(total: int, shape) -> tuple[int, int]:
    """Pick (rows, cols) with rows*cols == total that minimizes the padded vreg
    count ceil(rows/8)*ceil(cols/128), tie-breaking toward wider (lane-dense)
    cols.  cols is kept in [128, 4096] so the slab stays VMEM-friendly and the
    row dim remains splittable across grid blocks."""
    best = None
    d = 1
    while d * d <= total:
        if total % d == 0:
            for cols in (d, total // d):
                rows = total // cols
                if cols < 128 or cols > 4096:
                    continue
                vregs = (-(-rows // 8)) * (-(-cols // 128))
                key = (vregs, -cols)
                if best is None or key < best[0]:
                    best = (key, (rows, cols))
        d += 1
    if best is not None:
        return best[1]
    # Fallback: flatten leading dims (original (N*C, H*W)-style layout).
    return (total // shape[-1], shape[-1])


def _grid_blocks_for_device() -> int:
    """Per-generation grid depth for this HBM-bound elementwise op."""
    try:
        kind = jax.devices()[0].device_kind.lower()
    except Exception:
        return 2
    if "v7" in kind:
        return 1   # DMA leg ~0.35us ~= one grid-step's overhead: full-array block.
    if "v6" in kind:
        return 2   # ~break-even; 2 steps give a little in/out DMA overlap.
    return 4       # v5e and older: slower HBM, pipelining hides ~one DMA leg.


def _relu_pallas_impl(x: jax.Array) -> jax.Array:
    """ReLU on an NCHW tensor via a Pallas TPU kernel (in-place semantics)."""
    orig_shape = x.shape
    total = x.size

    rows, cols = _lane_dense_2d(total, orig_shape)
    x2d = x.reshape(rows, cols)

    nblk = _grid_blocks_for_device()
    block_rows = _round_up(-(-rows // nblk), 8)  # sublane-tile aligned
    if block_rows >= rows:
        block_rows = rows                        # full dim: (8,128) rule exempt
    grid0 = -(-rows // block_rows)               # ragged last block is masked

    out2d = pl.pallas_call(
        _relu_kernel,
        out_shape=jax.ShapeDtypeStruct((rows, cols), x2d.dtype),
        grid=(grid0,),
        in_specs=[pl.BlockSpec((block_rows, cols), lambda i: (i, 0))],
        out_specs=pl.BlockSpec((block_rows, cols), lambda i: (i, 0)),
        input_output_aliases={0: 0},  # inplace ReLU: reuse the input buffer
        compiler_params=pltpu.CompilerParams(
            dimension_semantics=("parallel",)),
    )(x2d)

    return out2d.reshape(orig_shape)


# Donate the activation so the aliasing is genuinely in-place (no defensive copy).
relu_pallas = jax.jit(_relu_pallas_impl, donate_argnums=(0,))


if __name__ == "__main__":
    key = jax.random.PRNGKey(0)
    # Shape implied by the module's forward: [1, 1392, 14, 14] (~1.09 MB, small).
    x = jax.random.normal(key, (1, 1392, 14, 14), dtype=jnp.float32)

    # Pure-JAX reference, computed before x is donated to the kernel.
    ref = jnp.maximum(x, 0.0)
    jax.block_until_ready(ref)

    y = relu_pallas(x)
    jax.block_until_ready(y)

    assert y.shape == (1, 1392, 14, 14) and y.dtype == jnp.float32
    assert jnp.array_equal(y, ref)

    print("KERNEL_OK")
</pallas_src>

<mosaic_0001>
module attributes {stable_mosaic.version = 11 : i64} {
  func.func @_relu_kernel(%arg0: i32, %arg1: memref<48x1624xf32, #tpu.memory_space<vmem>>, %arg2: memref<48x1624xf32, #tpu.memory_space<vmem>>) attributes {dimension_semantics = [#tpu.dimension_semantics<parallel>], iteration_bounds = array<i64: 4>, scalar_prefetch = 0 : i64, scratch_operands = 0 : i64, tpu.core_type = #tpu.core_type<tc>, window_params = [{transform_indices = @transform_0, window_bounds = array<i64: 48, 1624>}, {transform_indices = @transform_1, window_bounds = array<i64: 48, 1624>}]} {
    %c0 = arith.constant 0 : index
    %c0_0 = arith.constant 0 : index
    %0 = vector.load %arg1[%c0, %c0_0] : memref<48x1624xf32, #tpu.memory_space<vmem>>, vector<48x1624xf32>
    %cst = arith.constant 0.000000e+00 : f32
    %1 = vector.broadcast %cst : f32 to vector<48x1624xf32>
    %2 = arith.maximumf %0, %1 : vector<48x1624xf32>
    %c0_1 = arith.constant 0 : index
    %c0_2 = arith.constant 0 : index
    %3 = vector.load %arg2[%c0_1, %c0_2] : memref<48x1624xf32, #tpu.memory_space<vmem>>, vector<48x1624xf32>
    tpu.vector_store %arg2[%c0_1, %c0_2], %2 {strides = array<i32>} : memref<48x1624xf32, #tpu.memory_space<vmem>>, vector<48x1624xf32>,
    return
  }
  func.func @transform_0(%arg0: i32) -> (i32, i32) {
    %c0_i32 = arith.constant 0 : i32
    %c0_i32_0 = arith.constant 0 : i32
    return %arg0, %c0_i32 : i32, i32
  }
  func.func @transform_1(%arg0: i32) -> (i32, i32) {
    %c0_i32 = arith.constant 0 : i32
    %c0_i32_0 = arith.constant 0 : i32
    return %arg0, %c0_i32 : i32, i32
  }
}

</mosaic_0001>

<llo_original>
// kernel: _relu_pallas_impl.1
$region0: #{_relu_pallas_impl.1}
  #allocation0 [shape = 'u32[]', space=smem, size = 0x4, offset = 0x4, fixed_abs, tag = 'smem constant byte address 0x4 - core index']
  #allocation1 [shape = 'u32[144,128]{1,0:T(1,128)}', space=vmem, size = 0x12000, scoped, tag = 'internal scratch']
  %s0 = inlined_call_operand.vmem [shape: f32[168,1624], index: 0, kind: input, shape index: {}, may-alias: {0,1}]
  %s1 = inlined_call_operand.vmem [shape: f32[168,1624], index: 1, kind: output, shape index: {}, may-alias: {0,1}]
  %s2 = sld [smem:[#allocation0]]
  $region63: #{_relu_pallas_impl.1} parent=0
    _
  %s4 = ssub.s32 1, %s2
  %s5 = scalar_select 0, %s4, %s2
  $region1: #{_relu_pallas_impl.1} parent=0
    #allocation2 [shape = 'u8[638976]{0}', space=vmem, size = 0x9c000, scoped, tag = 'output window, operand 0']
    loop: start=0, step=1, limit=6
    $region2: #{_relu_pallas_impl.1} parent=1 // loop_pre_header
      _
    $region3: #{_relu_pallas_impl.1} parent=1 // loop_header
      %s7 = sphi 0, %s11
      %p8 = scmp.ge.s32.totalorder %s7, 6
      %s17 = sphi 0, %s19
      %s20 = sphi 0, %s17
      %s21 = sphi 0, %s20
      %s37 = sphi 0, %s21
      %s43 = sphi 0, %s45
      %s46 = sphi 0, %s43
      %s47 = sphi 0, %s46
      %s63 = sphi 0, %s47
    $region4: #{_relu_pallas_impl.1} parent=1 // loop_header_branch
      %10 = sbr.rel (%p8) target = $region8
    $region5: #{_relu_pallas_impl.1} parent=1 // loop_body
      %s12 = ssub.s32 %s7, 1
      %s13 = ssub.s32 %s7, 2
      %s14 = sadd.s32 %s7, 1
      %s15 = ssub.s32 %s7, %s14
      %p16 = scmp.eq.s32.totalorder %s15, 0
      %s18 = sadd.s32 %s17, 1
      %s19 = scalar_select %p16, %s17, %s18
      %p22 = pneg %p16
      %p23 = scmp.eq.s32.totalorder %s7, 3
      %p24 = por %p22, %p23
      %p25 = scmp.ne.s32.totalorder %s17, %s20
      %p26 = scmp.eq.s32.totalorder %s7, 0
      %p27 = por %p25, %p26
      %p28 = scmp.ne.s32.totalorder %s17, %s20
      %p29 = scmp.eq.s32.totalorder %s12, 3
      %p30 = por %p28, %p29
      %p31 = scmp.ne.s32.totalorder %s20, %s21
      %p32 = scmp.eq.s32.totalorder %s12, 0
      %p33 = por %p31, %p32
      %p34 = scmp.ne.s32.totalorder %s20, %s21
      %p35 = scmp.eq.s32.totalorder %s13, 3
      %p36 = por %p34, %p35
      %p38 = scmp.ne.s32.totalorder %s21, %s37
      %p39 = scmp.eq.s32.totalorder %s13, 0
      %p40 = por %p38, %p39
      %s41 = ssub.s32 %s7, %s14
      %p42 = scmp.eq.s32.totalorder %s41, 0
      %s44 = sadd.s32 %s43, 1
      %s45 = scalar_select %p42, %s43, %s44
      %p48 = pneg %p42
      %p49 = scmp.eq.s32.totalorder %s7, 3
      %p50 = por %p48, %p49
      %p51 = scmp.ne.s32.totalorder %s43, %s46
      %p52 = scmp.eq.s32.totalorder %s7, 0
      %p53 = por %p51, %p52
      %p54 = scmp.ne.s32.totalorder %s43, %s46
      %p55 = scmp.eq.s32.totalorder %s12, 3
      %p56 = por %p54, %p55
      %p57 = scmp.ne.s32.totalorder %s46, %s47
      %p58 = scmp.eq.s32.totalorder %s12, 0
      %p59 = por %p57, %p58
      %p60 = scmp.ne.s32.totalorder %s46, %s47
      %p61 = scmp.eq.s32.totalorder %s13, 3
      %p62 = por %p60, %p61
      %p64 = scmp.ne.s32.totalorder %s47, %s63
      %p65 = scmp.eq.s32.totalorder %s13, 0
      %p66 = por %p64, %p65
      %p67 = scmp.le.s32.totalorder 1, %s7
      %p68 = scmp.lt.s32.totalorder %s7, 5
      %p69 = pnand %p67, %p68
      %p70 = pneg %p69
      // Predicated region
      $region9: #{_relu_pallas_impl.1} parent=5 // pred_check
        _
      $region10: #{_relu_pallas_impl.1} parent=5 // pred_check_branch
        %72 = sbr.rel (%p69) target = $region12
      $region11: #{_relu_pallas_impl.1} parent=5 // pred_region
        %s73 = ssub.s32 %s7, 1
      $region12: #{_relu_pallas_impl.1} parent=5 // pred_fallthru
        _
      %p74 = scmp.lt.s32.totalorder %s7, 4
      // Predicated region
      $region13: #{_relu_pallas_impl.1} parent=5 // pred_check
        %p75 = pneg %p74
      $region14: #{_relu_pallas_impl.1} parent=5 // pred_check_branch
        %77 = sbr.rel (%p75) target = $region16
      $region15: #{_relu_pallas_impl.1} parent=5 // pred_region
        // Predicated region
        $region17: #{_relu_pallas_impl.1} parent=15 // pred_check
          %p78 = pneg %p27
        $region18: #{_relu_pallas_impl.1} parent=15 // pred_check_branch
          %80 = sbr.rel (%p78) target = $region20
        $region19: #{_relu_pallas_impl.1} parent=15 // pred_region
          %s81 = smul.u32 6, %s7
          %s82 = ssub.s32 21, %s81
          %p83 = scmp.lt.s32.totalorder %s82, 6
          %s84 = scalar_select %p83, %s82, 6
          %s85 = smul.u32 128, %s84
          %s86 = smul.u32 %s85, 13
          %p87 = scmp.lt.s32.totalorder %s81, 20
          %s88 = scalar_select %p87, %s81, 20
          %s89 = smul.addr %s88, 13
          %s90 = smul.addr %s89, 8
          %s91 = scalar_lea.vmem %s0, %s90
          %s92 = smul.u32 6, %s7
          %s93 = ssub.s32 21, %s92
          %p94 = scmp.lt.s32.totalorder %s93, 6
          %s95 = scalar_select %p94, %s93, 6
          %s96 = smul.u32 128, %s95
          %s97 = smul.u32 %s96, 13
        $region20: #{_relu_pallas_impl.1} parent=15 // pred_fallthru
          _
      $region16: #{_relu_pallas_impl.1} parent=5 // pred_fallthru
        _
      %p98 = scmp.le.s32.totalorder 1, %s7
      %p99 = scmp.lt.s32.totalorder %s7, 5
      %p100 = pnand %p98, %p99
      %p101 = pneg %p100
      // Predicated region
      $region21: #{_relu_pallas_impl.1} parent=5 // pred_check
        _
      $region22: #{_relu_pallas_impl.1} parent=5 // pred_check_branch
        %103 = sbr.rel (%p100) target = $region24
      $region23: #{_relu_pallas_impl.1} parent=5 // pred_region
        %s104 = ssub.s32 %s7, 1
        %s105 = smul.u32 6, %s12
        %s106 = ssub.s32 21, %s105
        %p107 = scmp.lt.s32.totalorder %s106, 6
        %s108 = scalar_select %p107, %s106, 6
        %s109 = smul.u32 128, %s108
        %s110 = smul.u32 %s109, 13
        %p111 = scmp.lt.s32.totalorder %s105, 20
        %s112 = scalar_select %p111, %s105, 20
        %s113 = smul.addr %s112, 13
        %s114 = smul.addr %s113, 8
        %s115 = scalar_lea.vmem %s0, %s114
        %p116 = pneg %p33
        %p117 = pneg %p30
        %p118 = pneg %p59
        %p119 = pneg %p56
        %s120 = sand.u32 %s46, 1
        %s121 = sand.u32 %s46, 1
        %s122 = smul.addr %s121, 624
        %s123 = scalar_lea.vmem [#allocation2], %s122
        %s124 = smul.u32 6, %s12
        %s125 = ssub.s32 21, %s124
        %p126 = scmp.lt.s32.totalorder %s125, 6
        %s127 = scalar_select %p126, %s125, 6
        %s128 = smul.u32 128, %s127
        %s129 = smul.u32 %s128, 13
        %p130 = scmp.lt.s32.totalorder %s124, 20
        %s131 = scalar_select %p130, %s124, 20
        %s132 = smul.addr %s131, 13
        %s133 = smul.addr %s132, 8
        %s134 = scalar_lea.vmem %s0, %s133
        %s135 = smul.u32 6, %s12
        %s136 = ssub.s32 21, %s135
        %p137 = scmp.lt.s32.totalorder %s136, 6
        %s138 = scalar_select %p137, %s136, 6
        %s139 = smul.u32 128, %s138
        %s140 = smul.u32 %s139, 13
        %s141 = smul.u32 6, %s12
        %s142 = ssub.s32 21, %s141
        %p143 = scmp.lt.s32.totalorder %s142, 6
        %s144 = scalar_select %p143, %s142, 6
        %s145 = smul.u32 128, %s144
        %s146 = smul.u32 %s145, 13
        %v147 = vld [vmem:[%s134] sm:$0xff]
        %v148 = vld [vmem:[%s134 + $0x8] sm:$0xff]
        %v149 = vld [vmem:[%s134 + $0x10] sm:$0xff]
        %v150 = vld [vmem:[%s134 + $0x18] sm:$0xff]
        %v151 = vld [vmem:[%s134 + $0x20] sm:$0xff]
        %v152 = vld [vmem:[%s134 + $0x28] sm:$0xff]
        %v153 = vld [vmem:[%s134 + $0x30] sm:$0xff]
        %v154 = vld [vmem:[%s134 + $0x38] sm:$0xff]
        %v155 = vld [vmem:[%s134 + $0x40] sm:$0xff]
        %v156 = vld [vmem:[%s134 + $0x48] sm:$0xff]
        %v157 = vld [vmem:[%s134 + $0x50] sm:$0xff]
        %v158 = vld [vmem:[%s134 + $0x58] sm:$0xff]
        %v159 = vld [vmem:[%s134 + $0x60] sm:$0xff]
        %v160 = vld [vmem:[%s134 + $0x68] sm:$0xff]
        %v161 = vld [vmem:[%s134 + $0x70] sm:$0xff]
        %v162 = vld [vmem:[%s134 + $0x78] sm:$0xff]
        %v163 = vld [vmem:[%s134 + $0x80] sm:$0xff]
        %v164 = vld [vmem:[%s134 + $0x88] sm:$0xff]
        %v165 = vld [vmem:[%s134 + $0x90] sm:$0xff]
        %v166 = vld [vmem:[%s134 + $0x98] sm:$0xff]
        %v167 = vld [vmem:[%s134 + $0xa0] sm:$0xff]
        %v168 = vld [vmem:[%s134 + $0xa8] sm:$0xff]
        %v169 = vld [vmem:[%s134 + $0xb0] sm:$0xff]
        %v170 = vld [vmem:[%s134 + $0xb8] sm:$0xff]
        %v171 = vld [vmem:[%s134 + $0xc0] sm:$0xff]
        %v172 = vld [vmem:[%s134 + $0xc8] sm:$0xff]
        %v173 = vld [vmem:[%s134 + $0xd0] sm:$0xff]
        %v174 = vld [vmem:[%s134 + $0xd8] sm:$0xff]
        %v175 = vld [vmem:[%s134 + $0xe0] sm:$0xff]
        %v176 = vld [vmem:[%s134 + $0xe8] sm:$0xff]
        %v177 = vld [vmem:[%s134 + $0xf0] sm:$0xff]
        %v178 = vld [vmem:[%s134 + $0xf8] sm:$0xff]
        %v179 = vld [vmem:[%s134 + $0x100] sm:$0xff]
        %v180 = vld [vmem:[%s134 + $0x108] sm:$0xff]
        %v181 = vld [vmem:[%s134 + $0x110] sm:$0xff]
        %v182 = vld [vmem:[%s134 + $0x118] sm:$0xff]
        %v183 = vld [vmem:[%s134 + $0x120] sm:$0xff]
        %v184 = vld [vmem:[%s134 + $0x128] sm:$0xff]
        %v185 = vld [vmem:[%s134 + $0x130] sm:$0xff]
        %v186 = vld [vmem:[%s134 + $0x138] sm:$0xff]
        %v187 = vld [vmem:[%s134 + $0x140] sm:$0xff]
        %v188 = vld [vmem:[%s134 + $0x148] sm:$0xff]
        %v189 = vld [vmem:[%s134 + $0x150] sm:$0xff]
        %v190 = vld [vmem:[%s134 + $0x158] sm:$0xff]
        %v191 = vld [vmem:[%s134 + $0x160] sm:$0xff]
        %v192 = vld [vmem:[%s134 + $0x168] sm:$0xff]
        %v193 = vld [vmem:[%s134 + $0x170] sm:$0xff]
        %v194 = vld [vmem:[%s134 + $0x178] sm:$0xff]
        %v195 = vld [vmem:[%s134 + $0x180] sm:$0xff]
        %v196 = vld [vmem:[%s134 + $0x188] sm:$0xff]
        %v197 = vld [vmem:[%s134 + $0x190] sm:$0xff]
        %v198 = vld [vmem:[%s134 + $0x198] sm:$0xff]
        %v199 = vld [vmem:[%s134 + $0x1a0] sm:$0xff]
        %v200 = vld [vmem:[%s134 + $0x1a8] sm:$0xff]
        %v201 = vld [vmem:[%s134 + $0x1b0] sm:$0xff]
        %v202 = vld [vmem:[%s134 + $0x1b8] sm:$0xff]
        %v203 = vld [vmem:[%s134 + $0x1c0] sm:$0xff]
        %v204 = vld [vmem:[%s134 + $0x1c8] sm:$0xff]
        %v205 = vld [vmem:[%s134 + $0x1d0] sm:$0xff]
        %v206 = vld [vmem:[%s134 + $0x1d8] sm:$0xff]
        %v207 = vld [vmem:[%s134 + $0x1e0] sm:$0xff]
        %v208 = vld [vmem:[%s134 + $0x1e8] sm:$0xff]
        %v209 = vld [vmem:[%s134 + $0x1f0] sm:$0xff]
        %v210 = vld [vmem:[%s134 + $0x1f8] sm:$0xff]
        %v211 = vld [vmem:[%s134 + $0x200] sm:$0xff]
        %v212 = vld [vmem:[%s134 + $0x208] sm:$0xff]
        %v213 = vld [vmem:[%s134 + $0x210] sm:$0xff]
        %v214 = vld [vmem:[%s134 + $0x218] sm:$0xff]
        %v215 = vld [vmem:[%s134 + $0x220] sm:$0xff]
        %v216 = vld [vmem:[%s134 + $0x228] sm:$0xff]
        %v217 = vld [vmem:[%s134 + $0x230] sm:$0xff]
        %v218 = vld [vmem:[%s134 + $0x238] sm:$0xff]
        %v219 = vld [vmem:[%s134 + $0x240] sm:$0xff]
        %v220 = vld [vmem:[%s134 + $0x248] sm:$0xff]
        %v221 = vld [vmem:[%s134 + $0x250] sm:$0xff]
        %v222 = vld [vmem:[%s134 + $0x258] sm:$0xff]
        %v223 = vld [vmem:[%s134 + $0x260] sm:$0xff]
        %v224 = vld [vmem:[%s134 + $0x268] sm:$0xff]
        %v225 = vmax.f32 %v147, 0.0
        %v226 = vmax.f32 %v148, 0.0
        %v227 = vmax.f32 %v149, 0.0
        %v228 = vmax.f32 %v150, 0.0
        %v229 = vmax.f32 %v151, 0.0
        %v230 = vmax.f32 %v152, 0.0
        %v231 = vmax.f32 %v153, 0.0
        %v232 = vmax.f32 %v154, 0.0
        %v233 = vmax.f32 %v155, 0.0
        %v234 = vmax.f32 %v156, 0.0
        %v235 = vmax.f32 %v157, 0.0
        %v236 = vmax.f32 %v158, 0.0
        %v237 = vmax.f32 %v159, 0.0
        %v238 = vmax.f32 %v160, 0.0
        %v239 = vmax.f32 %v161, 0.0
        %v240 = vmax.f32 %v162, 0.0
        %v241 = vmax.f32 %v163, 0.0
        %v242 = vmax.f32 %v164, 0.0
        %v243 = vmax.f32 %v165, 0.0
        %v244 = vmax.f32 %v166, 0.0
        %v245 = vmax.f32 %v167, 0.0
        %v246 = vmax.f32 %v168, 0.0
        %v247 = vmax.f32 %v169, 0.0
        %v248 = vmax.f32 %v170, 0.0
        %v249 = vmax.f32 %v171, 0.0
        %v250 = vmax.f32 %v172, 0.0
        %v251 = vmax.f32 %v173, 0.0
        %v252 = vmax.f32 %v174, 0.0
        %v253 = vmax.f32 %v175, 0.0
        %v254 = vmax.f32 %v176, 0.0
        %v255 = vmax.f32 %v177, 0.0
        %v256 = vmax.f32 %v178, 0.0
        %v257 = vmax.f32 %v179, 0.0
        %v258 = vmax.f32 %v180, 0.0
        %v259 = vmax.f32 %v181, 0.0
        %v260 = vmax.f32 %v182, 0.0
        %v261 = vmax.f32 %v183, 0.0
        %v262 = vmax.f32 %v184, 0.0
        %v263 = vmax.f32 %v185, 0.0
        %v264 = vmax.f32 %v186, 0.0
        %v265 = vmax.f32 %v187, 0.0
        %v266 = vmax.f32 %v188, 0.0
        %v267 = vmax.f32 %v189, 0.0
        %v268 = vmax.f32 %v190, 0.0
        %v269 = vmax.f32 %v191, 0.0
        %v270 = vmax.f32 %v192, 0.0
        %v271 = vmax.f32 %v193, 0.0
        %v272 = vmax.f32 %v194, 0.0
        %v273 = vmax.f32 %v195, 0.0
        %v274 = vmax.f32 %v196, 0.0
        %v275 = vmax.f32 %v197, 0.0
        %v276 = vmax.f32 %v198, 0.0
        %v277 = vmax.f32 %v199, 0.0
        %v278 = vmax.f32 %v200, 0.0
        %v279 = vmax.f32 %v201, 0.0
        %v280 = vmax.f32 %v202, 0.0
        %v281 = vmax.f32 %v203, 0.0
        %v282 = vmax.f32 %v204, 0.0
        %v283 = vmax.f32 %v205, 0.0
        %v284 = vmax.f32 %v206, 0.0
        %v285 = vmax.f32 %v207, 0.0
        %v286 = vmax.f32 %v208, 0.0
        %v287 = vmax.f32 %v209, 0.0
        %v288 = vmax.f32 %v210, 0.0
        %v289 = vmax.f32 %v211, 0.0
        %v290 = vmax.f32 %v212, 0.0
        %v291 = vmax.f32 %v213, 0.0
        %v292 = vmax.f32 %v214, 0.0
        %v293 = vmax.f32 %v215, 0.0
        %v294 = vmax.f32 %v216, 0.0
        %v295 = vmax.f32 %v217, 0.0
        %v296 = vmax.f32 %v218, 0.0
        %v297 = vmax.f32 %v219, 0.0
        %v298 = vmax.f32 %v220, 0.0
        %v299 = vmax.f32 %v221, 0.0
        %v300 = vmax.f32 %v222, 0.0
        %v301 = vmax.f32 %v223, 0.0
        %v302 = vmax.f32 %v224, 0.0
        %303 = vst [vmem:[%s123] sm:$0xff] %v225
        %304 = vst [vmem:[%s123 + $0x8] sm:$0xff] %v226
        %305 = vst [vmem:[%s123 + $0x10] sm:$0xff] %v227
        %306 = vst [vmem:[%s123 + $0x18] sm:$0xff] %v228
        %307 = vst [vmem:[%s123 + $0x20] sm:$0xff] %v229
        %308 = vst [vmem:[%s123 + $0x28] sm:$0xff] %v230
        %309 = vst [vmem:[%s123 + $0x30] sm:$0xff] %v231
        %310 = vst [vmem:[%s123 + $0x38] sm:$0xff] %v232
        %311 = vst [vmem:[%s123 + $0x40] sm:$0xff] %v233
        %312 = vst [vmem:[%s123 + $0x48] sm:$0xff] %v234
        %313 = vst [vmem:[%s123 + $0x50] sm:$0xff] %v235
        %314 = vst [vmem:[%s123 + $0x58] sm:$0xff] %v236
        %vm315 = vcmask 719872
        %316 = vst.msk [vmem:[%s123 + $0x60] sm:$0xff] %vm315, %v237
        %317 = vst [vmem:[%s123 + $0x68] sm:$0xff] %v238
        %318 = vst [vmem:[%s123 + $0x70] sm:$0xff] %v239
        %319 = vst [vmem:[%s123 + $0x78] sm:$0xff] %v240
        %320 = vst [vmem:[%s123 + $0x80] sm:$0xff] %v241
        %321 = vst [vmem:[%s123 + $0x88] sm:$0xff] %v242
        %322 = vst [vmem:[%s123 + $0x90] sm:$0xff] %v243
        %323 = vst [vmem:[%s123 + $0x98] sm:$0xff] %v244
        %324 = vst [vmem:[%s123 + $0xa0] sm:$0xff] %v245
        %325 = vst [vmem:[%s123 + $0xa8] sm:$0xff] %v246
        %326 = vst [vmem:[%s123 + $0xb0] sm:$0xff] %v247
        %327 = vst [vmem:[%s123 + $0xb8] sm:$0xff] %v248
        %328 = vst [vmem:[%s123 + $0xc0] sm:$0xff] %v249
        %329 = vst.msk [vmem:[%s123 + $0xc8] sm:$0xff] %vm315, %v250
        %330 = vst [vmem:[%s123 + $0xd0] sm:$0xff] %v251
        %331 = vst [vmem:[%s123 + $0xd8] sm:$0xff] %v252
        %332 = vst [vmem:[%s123 + $0xe0] sm:$0xff] %v253
        %333 = vst [vmem:[%s123 + $0xe8] sm:$0xff] %v254
        %334 = vst [vmem:[%s123 + $0xf0] sm:$0xff] %v255
        %335 = vst [vmem:[%s123 + $0xf8] sm:$0xff] %v256
        %336 = vst [vmem:[%s123 + $0x100] sm:$0xff] %v257
        %337 = vst [vmem:[%s123 + $0x108] sm:$0xff] %v258
        %338 = vst [vmem:[%s123 + $0x110] sm:$0xff] %v259
        %339 = vst [vmem:[%s123 + $0x118] sm:$0xff] %v260
        %340 = vst [vmem:[%s123 + $0x120] sm:$0xff] %v261
        %341 = vst [vmem:[%s123 + $0x128] sm:$0xff] %v262
        %342 = vst.msk [vmem:[%s123 + $0x130] sm:$0xff] %vm315, %v263
        %343 = vst [vmem:[%s123 + $0x138] sm:$0xff] %v264
        %344 = vst [vmem:[%s123 + $0x140] sm:$0xff] %v265
        %345 = vst [vmem:[%s123 + $0x148] sm:$0xff] %v266
        %346 = vst [vmem:[%s123 + $0x150] sm:$0xff] %v267
        %347 = vst [vmem:[%s123 + $0x158] sm:$0xff] %v268
        %348 = vst [vmem:[%s123 + $0x160] sm:$0xff] %v269
        %349 = vst [vmem:[%s123 + $0x168] sm:$0xff] %v270
        %350 = vst [vmem:[%s123 + $0x170] sm:$0xff] %v271
        %351 = vst [vmem:[%s123 + $0x178] sm:$0xff] %v272
        %352 = vst [vmem:[%s123 + $0x180] sm:$0xff] %v273
        %353 = vst [vmem:[%s123 + $0x188] sm:$0xff] %v274
        %354 = vst [vmem:[%s123 + $0x190] sm:$0xff] %v275
        %355 = vst.msk [vmem:[%s123 + $0x198] sm:$0xff] %vm315, %v276
        %356 = vst [vmem:[%s123 + $0x1a0] sm:$0xff] %v277
        %357 = vst [vmem:[%s123 + $0x1a8] sm:$0xff] %v278
        %358 = vst [vmem:[%s123 + $0x1b0] sm:$0xff] %v279
        %359 = vst [vmem:[%s123 + $0x1b8] sm:$0xff] %v280
        %360 = vst [vmem:[%s123 + $0x1c0] sm:$0xff] %v281
        %361 = vst [vmem:[%s123 + $0x1c8] sm:$0xff] %v282
        %362 = vst [vmem:[%s123 + $0x1d0] sm:$0xff] %v283
        %363 = vst [vmem:[%s123 + $0x1d8] sm:$0xff] %v284
        %364 = vst [vmem:[%s123 + $0x1e0] sm:$0xff] %v285
        %365 = vst [vmem:[%s123 + $0x1e8] sm:$0xff] %v286
        %366 = vst [vmem:[%s123 + $0x1f0] sm:$0xff] %v287
        %367 = vst [vmem:[%s123 + $0x1f8] sm:$0xff] %v288
        %368 = vst.msk [vmem:[%s123 + $0x200] sm:$0xff] %vm315, %v289
        %369 = vst [vmem:[%s123 + $0x208] sm:$0xff] %v290
        %370 = vst [vmem:[%s123 + $0x210] sm:$0xff] %v291
        %371 = vst [vmem:[%s123 + $0x218] sm:$0xff] %v292
        %372 = vst [vmem:[%s123 + $0x220] sm:$0xff] %v293
        %373 = vst [vmem:[%s123 + $0x228] sm:$0xff] %v294
        %374 = vst [vmem:[%s123 + $0x230] sm:$0xff] %v295
        %375 = vst [vmem:[%s123 + $0x238] sm:$0xff] %v296
        %376 = vst [vmem:[%s123 + $0x240] sm:$0xff] %v297
        %377 = vst [vmem:[%s123 + $0x248] sm:$0xff] %v298
        %378 = vst [vmem:[%s123 + $0x250] sm:$0xff] %v299
        %379 = vst [vmem:[%s123 + $0x258] sm:$0xff] %v300
        %380 = vst [vmem:[%s123 + $0x260] sm:$0xff] %v301
        %381 = vst.msk [vmem:[%s123 + $0x268] sm:$0xff] %vm315, %v302
        %s382 = sand.u32 %s46, 1
        %s383 = sand.u32 %s46, 1
        %s384 = smul.addr %s383, 624
        %s385 = scalar_lea.vmem [#allocation2], %s384
        // Predicated region
        $region25: #{_relu_pallas_impl.1} parent=23 // pred_check
          %p386 = pneg %p56
        $region26: #{_relu_pallas_impl.1} parent=23 // pred_check_branch
          %388 = sbr.rel (%p386) target = $region28
        $region27: #{_relu_pallas_impl.1} parent=23 // pred_region
          %s389 = smul.u32 6, %s12
          %s390 = ssub.s32 21, %s389
          %p391 = scmp.lt.s32.totalorder %s390, 6
          %s392 = scalar_select %p391, %s390, 6
          %s393 = smul.u32 128, %s392
          %s394 = smul.u32 %s393, 13
          %p395 = scmp.ne.s32.totalorder 0, %s394
          %s396 = smul.addr %s389, 13
          %s397 = smul.addr %s396, 8
          %s398 = scalar_lea.vmem %s1, %s397
          // Predicated region
          $region29: #{_relu_pallas_impl.1} parent=27 // pred_check
            %p399 = pneg %p395
          $region30: #{_relu_pallas_impl.1} parent=27 // pred_check_branch
            %401 = sbr.rel (%p399) target = $region32
          $region31: #{_relu_pallas_impl.1} parent=27 // pred_region
            // Predicated region
            $region33: #{_relu_pallas_impl.1} parent=31 // pred_check
              _
            $region34: #{_relu_pallas_impl.1} parent=31 // pred_check_branch
              %403 = sbr.rel (0) target = $region36
            $region35: #{_relu_pallas_impl.1} parent=31 // pred_region
              %s404 = sdiv.u32.pop %s392, 5
              %s405 = srem.u32.pop %s392, 5
              // While loop
              $region37: #{_relu_pallas_impl.1} parent=35 // loop_pre_header
                _
              $region38: #{_relu_pallas_impl.1} parent=35 // loop_header
                %s407 = sphi 0, %s409
                %p408 = scmp.ge.s32.totalorder %s407, %s404
                %s412 = sphi 0, %s547
                %s413 = sphi %s385, %s550
                %s414 = sphi %s398, %s551
              $region39: #{_relu_pallas_impl.1} parent=35 // loop_header_branch
                %411 = sbr.rel (%p408) target = $region43
              $region40: #{_relu_pallas_impl.1} parent=35 // loop_body
                %v415 = vld [vmem:[%s413] sm:$0xff]
                %416 = vst [vmem:[%s414] sm:$0xff] %v415
                %v417 = vld [vmem:[%s413 + $0x68] sm:$0xff]
                %418 = vst [vmem:[%s414 + $0x68] sm:$0xff] %v417
                %v419 = vld [vmem:[%s413 + $0xd0] sm:$0xff]
                %420 = vst [vmem:[%s414 + $0xd0] sm:$0xff] %v419
                %v421 = vld [vmem:[%s413 + $0x138] sm:$0xff]
                %422 = vst [vmem:[%s414 + $0x138] sm:$0xff] %v421
                %v423 = vld [vmem:[%s413 + $0x1a0] sm:$0xff]
                %424 = vst [vmem:[%s414 + $0x1a0] sm:$0xff] %v423
                %v425 = vld [vmem:[%s413 + $0x8] sm:$0xff]
                %426 = vst [vmem:[%s414 + $0x8] sm:$0xff] %v425
                %v427 = vld [vmem:[%s413 + $0x70] sm:$0xff]
                %428 = vst [vmem:[%s414 + $0x70] sm:$0xff] %v427
                %v429 = vld [vmem:[%s413 + $0xd8] sm:$0xff]
                %430 = vst [vmem:[%s414 + $0xd8] sm:$0xff] %v429
                %v431 = vld [vmem:[%s413 + $0x140] sm:$0xff]
                %432 = vst [vmem:[%s414 + $0x140] sm:$0xff] %v431
                %v433 = vld [vmem:[%s413 + $0x1a8] sm:$0xff]
                %434 = vst [vmem:[%s414 + $0x1a8] sm:$0xff] %v433
                %v435 = vld [vmem:[%s413 + $0x10] sm:$0xff]
                %436 = vst [vmem:[%s414 + $0x10] sm:$0xff] %v435
                %v437 = vld [vmem:[%s413 + $0x78] sm:$0xff]
                %438 = vst [vmem:[%s414 + $0x78] sm:$0xff] %v437
                %v439 = vld [vmem:[%s413 + $0xe0] sm:$0xff]
                %440 = vst [vmem:[%s414 + $0xe0] sm:$0xff] %v439
                %v441 = vld [vmem:[%s413 + $0x148] sm:$0xff]
                %442 = vst [vmem:[%s414 + $0x148] sm:$0xff] %v441
                %v443 = vld [vmem:[%s413 + $0x1b0] sm:$0xff]
                %444 = vst [vmem:[%s414 + $0x1b0] sm:$0xff] %v443
                %v445 = vld [vmem:[%s413 + $0x18] sm:$0xff]
                %446 = vst [vmem:[%s414 + $0x18] sm:$0xff] %v445
                %v447 = vld [vmem:[%s413 + $0x80] sm:$0xff]
                %448 = vst [vmem:[%s414 + $0x80] sm:$0xff] %v447
                %v449 = vld [vmem:[%s413 + $0xe8] sm:$0xff]
                %450 = vst [vmem:[%s414 + $0xe8] sm:$0xff] %v449
                %v451 = vld [vmem:[%s413 + $0x150] sm:$0xff]
                %452 = vst [vmem:[%s414 + $0x150] sm:$0xff] %v451
                %v453 = vld [vmem:[%s413 + $0x1b8] sm:$0xff]
                %454 = vst [vmem:[%s414 + $0x1b8] sm:$0xff] %v453
                %v455 = vld [vmem:[%s413 + $0x20] sm:$0xff]
                %456 = vst [vmem:[%s414 + $0x20] sm:$0xff] %v455
                %v457 = vld [vmem:[%s413 + $0x88] sm:$0xff]
                %458 = vst [vmem:[%s414 + $0x88] sm:$0xff] %v457
                %v459 = vld [vmem:[%s413 + $0xf0] sm:$0xff]
                %460 = vst [vmem:[%s414 + $0xf0] sm:$0xff] %v459
                %v461 = vld [vmem:[%s413 + $0x158] sm:$0xff]
                %462 = vst [vmem:[%s414 + $0x158] sm:$0xff] %v461
                %v463 = vld [vmem:[%s413 + $0x1c0] sm:$0xff]
                %464 = vst [vmem:[%s414 + $0x1c0] sm:$0xff] %v463
                %v465 = vld [vmem:[%s413 + $0x28] sm:$0xff]
                %466 = vst [vmem:[%s414 + $0x28] sm:$0xff] %v465
                %v467 = vld [vmem:[%s413 + $0x90] sm:$0xff]
                %468 = vst [vmem:[%s414 + $0x90] sm:$0xff] %v467
                %v469 = vld [vmem:[%s413 + $0xf8] sm:$0xff]
                %470 = vst [vmem:[%s414 + $0xf8] sm:$0xff] %v469
                %v471 = vld [vmem:[%s413 + $0x160] sm:$0xff]
                %472 = vst [vmem:[%s414 + $0x160] sm:$0xff] %v471
                %v473 = vld [vmem:[%s413 + $0x1c8] sm:$0xff]
                %474 = vst [vmem:[%s414 + $0x1c8] sm:$0xff] %v473
                %v475 = vld [vmem:[%s413 + $0x30] sm:$0xff]
                %476 = vst [vmem:[%s414 + $0x30] sm:$0xff] %v475
                %v477 = vld [vmem:[%s413 + $0x98] sm:$0xff]
                %478 = vst [vmem:[%s414 + $0x98] sm:$0xff] %v477
                %v479 = vld [vmem:[%s413 + $0x100] sm:$0xff]
                %480 = vst [vmem:[%s414 + $0x100] sm:$0xff] %v479
                %v481 = vld [vmem:[%s413 + $0x168] sm:$0xff]
                %482 = vst [vmem:[%s414 + $0x168] sm:$0xff] %v481
                %v483 = vld [vmem:[%s413 + $0x1d0] sm:$0xff]
                %484 = vst [vmem:[%s414 + $0x1d0] sm:$0xff] %v483
                %v485 = vld [vmem:[%s413 + $0x38] sm:$0xff]
                %486 = vst [vmem:[%s414 + $0x38] sm:$0xff] %v485
                %v487 = vld [vmem:[%s413 + $0xa0] sm:$0xff]
                %488 = vst [vmem:[%s414 + $0xa0] sm:$0xff] %v487
                %v489 = vld [vmem:[%s413 + $0x108] sm:$0xff]
                %490 = vst [vmem:[%s414 + $0x108] sm:$0xff] %v489
                %v491 = vld [vmem:[%s413 + $0x170] sm:$0xff]
                %492 = vst [vmem:[%s414 + $0x170] sm:$0xff] %v491
                %v493 = vld [vmem:[%s413 + $0x1d8] sm:$0xff]
                %494 = vst [vmem:[%s414 + $0x1d8] sm:$0xff] %v493
                %v495 = vld [vmem:[%s413 + $0x40] sm:$0xff]
                %496 = vst [vmem:[%s414 + $0x40] sm:$0xff] %v495
                %v497 = vld [vmem:[%s413 + $0xa8] sm:$0xff]
                %498 = vst [vmem:[%s414 + $0xa8] sm:$0xff] %v497
                %v499 = vld [vmem:[%s413 + $0x110] sm:$0xff]
                %500 = vst [vmem:[%s414 + $0x110] sm:$0xff] %v499
                %v501 = vld [vmem:[%s413 + $0x178] sm:$0xff]
                %502 = vst [vmem:[%s414 + $0x178] sm:$0xff] %v501
                %v503 = vld [vmem:[%s413 + $0x1e0] sm:$0xff]
                %504 = vst [vmem:[%s414 + $0x1e0] sm:$0xff] %v503
                %v505 = vld [vmem:[%s413 + $0x48] sm:$0xff]
                %506 = vst [vmem:[%s414 + $0x48] sm:$0xff] %v505
                %v507 = vld [vmem:[%s413 + $0xb0] sm:$0xff]
                %508 = vst [vmem:[%s414 + $0xb0] sm:$0xff] %v507
                %v509 = vld [vmem:[%s413 + $0x118] sm:$0xff]
                %510 = vst [vmem:[%s414 + $0x118] sm:$0xff] %v509
                %v511 = vld [vmem:[%s413 + $0x180] sm:$0xff]
                %512 = vst [vmem:[%s414 + $0x180] sm:$0xff] %v511
                %v513 = vld [vmem:[%s413 + $0x1e8] sm:$0xff]
                %514 = vst [vmem:[%s414 + $0x1e8] sm:$0xff] %v513
                %v515 = vld [vmem:[%s413 + $0x50] sm:$0xff]
                %516 = vst [vmem:[%s414 + $0x50] sm:$0xff] %v515
                %v517 = vld [vmem:[%s413 + $0xb8] sm:$0xff]
                %518 = vst [vmem:[%s414 + $0xb8] sm:$0xff] %v517
                %v519 = vld [vmem:[%s413 + $0x120] sm:$0xff]
                %520 = vst [vmem:[%s414 + $0x120] sm:$0xff] %v519
                %v521 = vld [vmem:[%s413 + $0x188] sm:$0xff]
                %522 = vst [vmem:[%s414 + $0x188] sm:$0xff] %v521
                %v523 = vld [vmem:[%s413 + $0x1f0] sm:$0xff]
                %524 = vst [vmem:[%s414 + $0x1f0] sm:$0xff] %v523
                %v525 = vld [vmem:[%s413 + $0x58] sm:$0xff]
                %526 = vst [vmem:[%s414 + $0x58] sm:$0xff] %v525
                %v527 = vld [vmem:[%s413 + $0xc0] sm:$0xff]
                %528 = vst [vmem:[%s414 + $0xc0] sm:$0xff] %v527
                %v529 = vld [vmem:[%s413 + $0x128] sm:$0xff]
                %530 = vst [vmem:[%s414 + $0x128] sm:$0xff] %v529
                %v531 = vld [vmem:[%s413 + $0x190] sm:$0xff]
                %532 = vst [vmem:[%s414 + $0x190] sm:$0xff] %v531
                %v533 = vld [vmem:[%s413 + $0x1f8] sm:$0xff]
                %534 = vst [vmem:[%s414 + $0x1f8] sm:$0xff] %v533
                %v535 = vld [vmem:[%s413 + $0x60] sm:$0xff]
                %536 = vst [vmem:[%s414 + $0x60] sm:$0xff] %v535
                %v537 = vld [vmem:[%s413 + $0xc8] sm:$0xff]
                %538 = vst [vmem:[%s414 + $0xc8] sm:$0xff] %v537
                %v539 = vld [vmem:[%s413 + $0x130] sm:$0xff]
                %540 = vst [vmem:[%s414 + $0x130] sm:$0xff] %v539
                %v541 = vld [vmem:[%s413 + $0x198] sm:$0xff]
                %542 = vst [vmem:[%s414 + $0x198] sm:$0xff] %v541
                %v543 = vld [vmem:[%s413 + $0x200] sm:$0xff]
                %544 = vst [vmem:[%s414 + $0x200] sm:$0xff] %v543
                %s545 = sadd.s32 1, %s412
                %p546 = scmp.ge.s32.totalorder %s545, %s404
                %s547 = scalar_select %p546, 0, %s545
                %s548 = smul.u32 %s547, 520
                %s549 = smul.u32 %s547, 520
                %s550 = scalar_lea.vmem %s385, %s548 [#allocation2]
                %s551 = scalar_lea.vmem %s398, %s549
              $region41: #{_relu_pallas_impl.1} parent=35 // loop_footer
                %s409 = sadd.s32 %s407, 1
              $region42: #{_relu_pallas_impl.1} parent=35 // loop_footer_branch
                %406 = sbr.rel target = $region38
              $region43: #{_relu_pallas_impl.1} parent=35 // loop_exit
                _
              %s552 = sdiv.u32.pop %s392, 5
              %s553 = srem.u32.pop %s392, 5
              %s554 = smul.u32 %s552, 5
              %s555 = smul.u32 104, %s554
              %s556 = scalar_lea.vmem %s385, %s555 [#allocation2]
              %s557 = smul.u32 104, %s554
              %s558 = scalar_lea.vmem %s398, %s557
              // While loop
              $region44: #{_relu_pallas_impl.1} parent=35 // loop_pre_header
                _
              $region45: #{_relu_pallas_impl.1} parent=35 // loop_header
                %s560 = sphi 0, %s562
                %p561 = scmp.ge.s32.totalorder %s560, %s553
                %s565 = sphi 0, %s596
                %s566 = sphi %s556, %s599
                %s567 = sphi %s558, %s600
              $region46: #{_relu_pallas_impl.1} parent=35 // loop_header_branch
                %564 = sbr.rel (%p561) target = $region50
              $region47: #{_relu_pallas_impl.1} parent=35 // loop_body
                %v568 = vld [vmem:[%s566] sm:$0xff]
                %569 = vst [vmem:[%s567] sm:$0xff] %v568
                %v570 = vld [vmem:[%s566 + $0x8] sm:$0xff]
                %571 = vst [vmem:[%s567 + $0x8] sm:$0xff] %v570
                %v572 = vld [vmem:[%s566 + $0x10] sm:$0xff]
                %573 = vst [vmem:[%s567 + $0x10] sm:$0xff] %v572
                %v574 = vld [vmem:[%s566 + $0x18] sm:$0xff]
                %575 = vst [vmem:[%s567 + $0x18] sm:$0xff] %v574
                %v576 = vld [vmem:[%s566 + $0x20] sm:$0xff]
                %577 = vst [vmem:[%s567 + $0x20] sm:$0xff] %v576
                %v578 = vld [vmem:[%s566 + $0x28] sm:$0xff]
                %579 = vst [vmem:[%s567 + $0x28] sm:$0xff] %v578
                %v580 = vld [vmem:[%s566 + $0x30] sm:$0xff]
                %581 = vst [vmem:[%s567 + $0x30] sm:$0xff] %v580
                %v582 = vld [vmem:[%s566 + $0x38] sm:$0xff]
                %583 = vst [vmem:[%s567 + $0x38] sm:$0xff] %v582
                %v584 = vld [vmem:[%s566 + $0x40] sm:$0xff]
                %585 = vst [vmem:[%s567 + $0x40] sm:$0xff] %v584
                %v586 = vld [vmem:[%s566 + $0x48] sm:$0xff]
                %587 = vst [vmem:[%s567 + $0x48] sm:$0xff] %v586
                %v588 = vld [vmem:[%s566 + $0x50] sm:$0xff]
                %589 = vst [vmem:[%s567 + $0x50] sm:$0xff] %v588
                %v590 = vld [vmem:[%s566 + $0x58] sm:$0xff]
                %591 = vst [vmem:[%s567 + $0x58] sm:$0xff] %v590
                %v592 = vld [vmem:[%s566 + $0x60] sm:$0xff]
                %593 = vst [vmem:[%s567 + $0x60] sm:$0xff] %v592
                %s594 = sadd.s32 1, %s565
                %p595 = scmp.ge.s32.totalorder %s594, %s553
                %s596 = scalar_select %p595, 0, %s594
                %s597 = smul.u32 %s596, 104
                %s598 = smul.u32 %s596, 104
                %s599 = scalar_lea.vmem %s556, %s597 [#allocation2]
                %s600 = scalar_lea.vmem %s558, %s598
              $region48: #{_relu_pallas_impl.1} parent=35 // loop_footer
                %s562 = sadd.s32 %s560, 1
              $region49: #{_relu_pallas_impl.1} parent=35 // loop_footer_branch
                %559 = sbr.rel target = $region45
              $region50: #{_relu_pallas_impl.1} parent=35 // loop_exit
                _
            $region36: #{_relu_pallas_impl.1} parent=31 // pred_fallthru
              _
            // Predicated region
            $region51: #{_relu_pallas_impl.1} parent=31 // pred_check
              _
            $region52: #{_relu_pallas_impl.1} parent=31 // pred_check_branch
              %602 = sbr.rel target = $region54
            $region53: #{_relu_pallas_impl.1} parent=31 // pred_region
              _
            $region54: #{_relu_pallas_impl.1} parent=31 // pred_fallthru
              _
          $region32: #{_relu_pallas_impl.1} parent=27 // pred_fallthru
            _
          %603 = vnop
        $region28: #{_relu_pallas_impl.1} parent=23 // pred_fallthru
          _
      $region24: #{_relu_pallas_impl.1} parent=5 // pred_fallthru
        _
      %p604 = scmp.le.s32.totalorder 2, %s7
      // Predicated region
      $region55: #{_relu_pallas_impl.1} parent=5 // pred_check
        %p605 = pneg %p604
      $region56: #{_relu_pallas_impl.1} parent=5 // pred_check_branch
        %607 = sbr.rel (%p605) target = $region58
      $region57: #{_relu_pallas_impl.1} parent=5 // pred_region
        %s608 = ssub.s32 %s7, 2
        // Predicated region
        $region59: #{_relu_pallas_impl.1} parent=57 // pred_check
          %p609 = pneg %p62
        $region60: #{_relu_pallas_impl.1} parent=57 // pred_check_branch
          %611 = sbr.rel (%p609) target = $region62
        $region61: #{_relu_pallas_impl.1} parent=57 // pred_region
          %s612 = sand.u32 %s47, 1
          %s613 = sand.u32 %s47, 1
          %s614 = smul.addr %s613, 624
          %s615 = scalar_lea.vmem [#allocation2], %s614
        $region62: #{_relu_pallas_impl.1} parent=57 // pred_fallthru
          _
      $region58: #{_relu_pallas_impl.1} parent=5 // pred_fallthru
        _
    $region6: #{_relu_pallas_impl.1} parent=1 // loop_footer
      %s11 = sadd.s32 1, %s7
    $region7: #{_relu_pallas_impl.1} parent=1 // loop_footer_branch
      %6 = sbr.rel target = $region3
    $region8: #{_relu_pallas_impl.1} parent=1 // loop_exit
      _

</llo_original>
